<compile_context>
chip_gen: v7x
topology: tpu7x:2x2x1
jax: 0.10.0
libtpu: 0.0.40
codegen_flags: <defaults>
</compile_context>

<pallas_src>
import jax
import jax.numpy as jnp
from jax.experimental import pallas as pl
from jax.experimental.pallas import tpu as pltpu


VMEM_LIMIT_BYTES = 48 * 1024 * 1024  # headroom under v7x's 64 MiB physical VMEM


# ---------------------------------------------------------------------------
# Kernel 1: h1 = relu((A_hat @ X) @ W1 + b1)  (bf16 output), row-tiled with
# a K-reduction grid axis; X / W1 / b1 are VMEM-resident.
# ---------------------------------------------------------------------------
def conv1_kernel(a_ref, x_ref, w1_ref, b1_ref, h1_ref, ax_acc):
    k = pl.program_id(1)
    tk = a_ref.shape[1]

    @pl.when(k == 0)
    def _():
        ax_acc[...] = jnp.zeros_like(ax_acc)

    start = pl.multiple_of(k * tk, tk)
    # (TM, TK) bf16 @ (TK, F) bf16 -> f32 accumulate (X resident in VMEM).
    ax_acc[...] += jnp.dot(a_ref[...], x_ref[pl.ds(start, tk), :],
                           preferred_element_type=jnp.float32)

    @pl.when(k == pl.num_programs(1) - 1)
    def _():
        pre = jnp.dot(ax_acc[...].astype(jnp.bfloat16), w1_ref[...],
                      preferred_element_type=jnp.float32) + b1_ref[...]
        # TODO(synk): training-mode dropout (p=0.5) omitted (eval-mode identity).
        h1_ref[...] = jnp.maximum(pre, 0.0).astype(h1_ref.dtype)


def gcn_conv1(a_bf, x_bf, w1_bf, b1, *, tm=512, tk=512):
    n = a_bf.shape[0]
    f = x_bf.shape[1]
    h = w1_bf.shape[1]
    tm = min(tm, n)
    tk = min(tk, n)
    assert n % tm == 0 and n % tk == 0
    return pl.pallas_call(
        conv1_kernel,
        out_shape=jax.ShapeDtypeStruct((n, h), jnp.bfloat16),
        grid_spec=pltpu.PrefetchScalarGridSpec(
            num_scalar_prefetch=0,
            grid=(n // tm, n // tk),
            in_specs=[
                pl.BlockSpec((tm, tk), lambda i, k: (i, k)),   # A_hat tile (streamed)
                pl.BlockSpec((n, f), lambda i, k: (0, 0)),     # X (VMEM-resident)
                pl.BlockSpec((f, h), lambda i, k: (0, 0)),     # W1 (resident)
                pl.BlockSpec((1, h), lambda i, k: (0, 0)),     # b1 (resident)
            ],
            out_specs=pl.BlockSpec((tm, h), lambda i, k: (i, 0)),
            scratch_shapes=[pltpu.VMEM((tm, f), jnp.float32)],
        ),
        compiler_params=pltpu.CompilerParams(
            dimension_semantics=("parallel", "arbitrary"),
            vmem_limit_bytes=VMEM_LIMIT_BYTES),
    )(a_bf, x_bf, w1_bf, b1)


# ---------------------------------------------------------------------------
# Kernel 2: h2 = relu(A_hat @ h1 @ W2 + b2), fused with the mean pool as
# per-row-tile partials  pooled_i = P[:, rows_i] @ h2_tile  so the row axis
# stays "parallel"; h1 / W2 / b2 are VMEM-resident.
# ---------------------------------------------------------------------------
def conv2_pool_kernel(a_ref, h1_ref, w2_ref, b2_ref, p_ref, pooled_ref, ah_acc):
    k = pl.program_id(1)
    tk = a_ref.shape[1]

    @pl.when(k == 0)
    def _():
        ah_acc[...] = jnp.zeros_like(ah_acc)

    start = pl.multiple_of(k * tk, tk)
    # (TM, TK) bf16 @ (TK, H) bf16 -> f32 accumulate (h1 resident in VMEM).
    ah_acc[...] += jnp.dot(a_ref[...], h1_ref[pl.ds(start, tk), :],
                           preferred_element_type=jnp.float32)

    @pl.when(k == pl.num_programs(1) - 1)
    def _():
        h2 = jnp.dot(ah_acc[...].astype(jnp.bfloat16), w2_ref[...],
                     preferred_element_type=jnp.float32) + b2_ref[...]
        h2 = jnp.maximum(h2, 0.0)
        # TODO(synk): training-mode dropout (p=0.5) omitted (eval-mode identity).
        pooled_ref[0] = jnp.dot(p_ref[...], h2.astype(jnp.bfloat16),
                                preferred_element_type=jnp.float32)


def gcn_conv2_pool(a_bf, h1_bf, w2_bf, b2, pool_bf, *, tm=512, tk=512):
    n = a_bf.shape[0]
    h = w2_bf.shape[1]
    g = pool_bf.shape[0]
    tm = min(tm, n)
    tk = min(tk, n)
    assert n % tm == 0 and n % tk == 0
    return pl.pallas_call(
        conv2_pool_kernel,
        out_shape=jax.ShapeDtypeStruct((n // tm, g, h), jnp.float32),
        grid_spec=pltpu.PrefetchScalarGridSpec(
            num_scalar_prefetch=0,
            grid=(n // tm, n // tk),
            in_specs=[
                pl.BlockSpec((tm, tk), lambda i, k: (i, k)),   # A_hat tile (streamed)
                pl.BlockSpec((n, h), lambda i, k: (0, 0)),     # h1 (VMEM-resident)
                pl.BlockSpec((h, h), lambda i, k: (0, 0)),     # W2 (resident)
                pl.BlockSpec((1, h), lambda i, k: (0, 0)),     # b2 (resident)
                pl.BlockSpec((g, tm), lambda i, k: (0, i)),    # P column tile
            ],
            out_specs=pl.BlockSpec((1, g, h), lambda i, k: (i, 0, 0)),
            scratch_shapes=[pltpu.VMEM((tm, h), jnp.float32)],
        ),
        compiler_params=pltpu.CompilerParams(
            dimension_semantics=("parallel", "arbitrary"),
            vmem_limit_bytes=VMEM_LIMIT_BYTES),
    )(a_bf, h1_bf, w2_bf, b2, pool_bf)


# ---------------------------------------------------------------------------
# Full forward (wrapper).
# ---------------------------------------------------------------------------
def _pad_cols(m, target):
    pad = target - m.shape[1]
    return m if pad == 0 else jnp.pad(m, ((0, 0), (0, pad)))


def _pad_rows(m, target):
    pad = target - m.shape[0]
    return m if pad == 0 else jnp.pad(m, ((0, pad), (0, 0)))


def gcn_forward(a_hat, x, w1, b1, w2, b2, pool_mat, wfc, bfc, *, tm=512, tk=512):
    hidden = w1.shape[1]
    hp = ((hidden + 127) // 128) * 128   # lane-dense hidden dim (zero padding is exact)

    a_bf = a_hat.astype(jnp.bfloat16)
    x_bf = x.astype(jnp.bfloat16)
    w1_bf = _pad_cols(w1, hp).astype(jnp.bfloat16)
    b1_p = _pad_cols(b1, hp)
    w2_bf = _pad_cols(_pad_rows(w2, hp), hp).astype(jnp.bfloat16)
    b2_p = _pad_cols(b2, hp)
    p_bf = pool_mat.astype(jnp.bfloat16)
    wfc_p = _pad_rows(wfc, hp)

    # conv1 emits bf16 h1 directly -> fed to conv2 with no extra HBM cast pass.
    h1 = gcn_conv1(a_bf, x_bf, w1_bf, b1_p, tm=tm, tk=tk)                  # (N, hp) bf16
    partials = gcn_conv2_pool(a_bf, h1, w2_bf, b2_p, p_bf, tm=tm, tk=tk)   # (N/tm, G, hp)
    pooled = jnp.sum(partials, axis=0)                                     # (G, hp) f32
    # Tiny (hidden -> output_dim=1) FC in the wrapper: a last dim of 1 inside
    # the kernel would force masked vst.msk partial stores.
    return pooled @ wfc_p + bfc


# ---------------------------------------------------------------------------
# Host-side glue: dense normalized adjacency and mean-pool matrix.
# ---------------------------------------------------------------------------
def build_normalized_adjacency(edge_index, num_nodes):
    """Dense A_hat = D^-1/2 (A + I) D^-1/2 as in torch_geometric GCNConv."""
    src, dst = edge_index[0], edge_index[1]
    a = jnp.zeros((num_nodes, num_nodes), jnp.float32)
    a = a.at[src, dst].set(1.0)
    # maximum (not add) so pre-existing self loops are not double-counted.
    a = jnp.maximum(a, jnp.eye(num_nodes, dtype=jnp.float32))
    deg = jnp.sum(a, axis=1)
    d_inv_sqrt = jnp.where(deg > 0, 1.0 / jnp.sqrt(deg), 0.0)
    return d_inv_sqrt[:, None] * a * d_inv_sqrt[None, :]


def build_pool_matrix(batch, num_graphs):
    """(G, N) matrix with 1/count_g at (g, n) when batch[n] == g."""
    onehot = (batch[None, :] == jnp.arange(num_graphs)[:, None]).astype(jnp.float32)
    counts = jnp.maximum(jnp.sum(onehot, axis=1, keepdims=True), 1.0)
    return onehot / counts


if __name__ == "__main__":
    key = jax.random.PRNGKey(0)
    k_x, k_w1, k_w2, k_wfc = jax.random.split(key, 4)

    # Synthetic batch: 4 graphs x 64 nodes -> N = 256.
    num_graphs = 4
    nodes_per_graph = 64
    num_nodes = num_graphs * nodes_per_graph
    input_dim = 8
    hidden_dim = 32
    output_dim = 1

    x = jax.random.normal(k_x, (num_nodes, input_dim), jnp.float32)

    # Ring edges within each graph, both directions stored.
    offs = jnp.arange(nodes_per_graph, dtype=jnp.int32)
    src_list, dst_list = [], []
    for g in range(num_graphs):
        base = g * nodes_per_graph
        s = base + offs
        d = base + (offs + 1) % nodes_per_graph
        src_list += [s, d]
        dst_list += [d, s]
    edge_index = jnp.stack([jnp.concatenate(src_list), jnp.concatenate(dst_list)])
    batch = jnp.repeat(jnp.arange(num_graphs, dtype=jnp.int32), nodes_per_graph)

    # Deterministic parameter init (shapes as implied by GCN.__init__).
    w1 = 0.1 * jax.random.normal(k_w1, (input_dim, hidden_dim), jnp.float32)
    b1 = jnp.zeros((1, hidden_dim), jnp.float32)
    w2 = 0.1 * jax.random.normal(k_w2, (hidden_dim, hidden_dim), jnp.float32)
    b2 = jnp.zeros((1, hidden_dim), jnp.float32)
    wfc = 0.1 * jax.random.normal(k_wfc, (hidden_dim, output_dim), jnp.float32)
    bfc = jnp.zeros((output_dim,), jnp.float32)

    a_hat = build_normalized_adjacency(edge_index, num_nodes)
    pool_mat = build_pool_matrix(batch, num_graphs)

    # Production defaults are tm=tk=512; use 128 here so the small N=256 test
    # exercises a real 2x2 grid (K reduction + per-tile pooled partials).
    out = gcn_forward(a_hat, x, w1, b1, w2, b2, pool_mat, wfc, bfc, tm=128, tk=128)
    out = jax.block_until_ready(out)

    # Pure-JAX reference mirroring the kernel's mixed precision
    # (bf16 MXU inputs, f32 accumulation; zero hidden-padding is exact).
    a_bf = a_hat.astype(jnp.bfloat16)
    x_bf = x.astype(jnp.bfloat16)
    w1_bf = w1.astype(jnp.bfloat16)
    w2_bf = w2.astype(jnp.bfloat16)
    p_bf = pool_mat.astype(jnp.bfloat16)

    ax = jnp.dot(a_bf, x_bf, preferred_element_type=jnp.float32)
    h1_ref = jnp.maximum(
        jnp.dot(ax.astype(jnp.bfloat16), w1_bf,
                preferred_element_type=jnp.float32) + b1, 0.0)
    ah = jnp.dot(a_bf, h1_ref.astype(jnp.bfloat16),
                 preferred_element_type=jnp.float32)
    h2_ref = jnp.maximum(
        jnp.dot(ah.astype(jnp.bfloat16), w2_bf,
                preferred_element_type=jnp.float32) + b2, 0.0)
    pooled_ref = jnp.dot(p_bf, h2_ref.astype(jnp.bfloat16),
                         preferred_element_type=jnp.float32)
    ref = pooled_ref @ wfc + bfc

    assert out.shape == (num_graphs, output_dim)
    assert jnp.allclose(out, ref, atol=1e-3, rtol=1e-3), (out, ref)

    print("KERNEL_OK")
</pallas_src>

<mosaic_0001>
module attributes {stable_mosaic.version = 11 : i64} {
  func.func @conv1_kernel(%arg0: i32, %arg1: i32, %arg2: memref<128x128xbf16, #tpu.memory_space<vmem>>, %arg3: memref<256x8xbf16, #tpu.memory_space<vmem>>, %arg4: memref<8x128xbf16, #tpu.memory_space<vmem>>, %arg5: memref<1x128xf32, #tpu.memory_space<vmem>>, %arg6: memref<128x128xbf16, #tpu.memory_space<vmem>>, %arg7: memref<128x8xf32, #tpu.memory_space<vmem>>) attributes {dimension_semantics = [#tpu.dimension_semantics<parallel>, #tpu.dimension_semantics<arbitrary>], iteration_bounds = array<i64: 2, 2>, scalar_prefetch = 0 : i64, scratch_operands = 1 : i64, tpu.core_type = #tpu.core_type<tc>, window_params = [{transform_indices = @transform_0, window_bounds = array<i64: 128, 128>}, {pipeline_mode = #tpu.pipeline_mode<synchronous>, transform_indices = @transform_1, window_bounds = array<i64: 256, 8>}, {pipeline_mode = #tpu.pipeline_mode<synchronous>, transform_indices = @transform_2, window_bounds = array<i64: 8, 128>}, {pipeline_mode = #tpu.pipeline_mode<synchronous>, transform_indices = @transform_3, window_bounds = array<i64: 1, 128>}, {transform_indices = @transform_4, window_bounds = array<i64: 128, 128>}]} {
    %c0_i32 = arith.constant 0 : i32
    %0 = arith.cmpi eq, %arg1, %c0_i32 : i32
    %1 = arith.extui %0 : i1 to i32
    %c0_i32_0 = arith.constant 0 : i32
    %2 = arith.cmpi ne, %1, %c0_i32_0 : i32
    scf.if %2 {
      %cst_8 = arith.constant 0.000000e+00 : f32
      %15 = vector.broadcast %cst_8 : f32 to vector<128x8xf32>
      %c0_9 = arith.constant 0 : index
      %c0_10 = arith.constant 0 : index
      %16 = vector.load %arg7[%c0_9, %c0_10] : memref<128x8xf32, #tpu.memory_space<vmem>>, vector<128x8xf32>
      tpu.vector_store %arg7[%c0_9, %c0_10], %15 {strides = array<i32>} : memref<128x8xf32, #tpu.memory_space<vmem>>, vector<128x8xf32>,
    } else {
    }
    %c128_i32 = arith.constant 128 : i32
    %3 = arith.muli %arg1, %c128_i32 : i32
    %4 = tpu.assume_multiple %3, 128 : i32
    %c0 = arith.constant 0 : index
    %c0_1 = arith.constant 0 : index
    %5 = vector.load %arg7[%c0, %c0_1] : memref<128x8xf32, #tpu.memory_space<vmem>>, vector<128x8xf32>
    %c0_2 = arith.constant 0 : index
    %c0_3 = arith.constant 0 : index
    %6 = vector.load %arg2[%c0_2, %c0_3] : memref<128x128xbf16, #tpu.memory_space<vmem>>, vector<128x128xbf16>
    %7 = arith.index_cast %4 : i32 to index
    %c0_4 = arith.constant 0 : index
    %8 = vector.load %arg3[%7, %c0_4] : memref<256x8xbf16, #tpu.memory_space<vmem>>, vector<128x8xbf16>
    %cst = arith.constant dense<0.000000e+00> : vector<128x8xf32>
    %9 = tpu.matmul %6, %8, %cst {dimension_numbers = #tpu.dot_dimension_numbers<[1], [0], [0], [1], [0, 0, 1, 1], [], []>} : vector<128x128xbf16>, vector<128x8xbf16>, vector<128x8xf32> -> vector<128x8xf32>
    %10 = arith.addf %5, %9 : vector<128x8xf32>
    %c0_5 = arith.constant 0 : index
    %c0_6 = arith.constant 0 : index
    %11 = vector.load %arg7[%c0_5, %c0_6] : memref<128x8xf32, #tpu.memory_space<vmem>>, vector<128x8xf32>
    tpu.vector_store %arg7[%c0_5, %c0_6], %10 {strides = array<i32>} : memref<128x8xf32, #tpu.memory_space<vmem>>, vector<128x8xf32>,
    %c1_i32 = arith.constant 1 : i32
    %12 = arith.cmpi eq, %arg1, %c1_i32 : i32
    %13 = arith.extui %12 : i1 to i32
    %c0_i32_7 = arith.constant 0 : i32
    %14 = arith.cmpi ne, %13, %c0_i32_7 : i32
    scf.if %14 {
      %c0_8 = arith.constant 0 : index
      %c0_9 = arith.constant 0 : index
      %15 = vector.load %arg7[%c0_8, %c0_9] : memref<128x8xf32, #tpu.memory_space<vmem>>, vector<128x8xf32>
      %16 = arith.truncf %15 : vector<128x8xf32> to vector<128x8xbf16>
      %c0_10 = arith.constant 0 : index
      %c0_11 = arith.constant 0 : index
      %17 = vector.load %arg4[%c0_10, %c0_11] : memref<8x128xbf16, #tpu.memory_space<vmem>>, vector<8x128xbf16>
      %cst_12 = arith.constant dense<0.000000e+00> : vector<128x128xf32>
      %18 = tpu.matmul %16, %17, %cst_12 {dimension_numbers = #tpu.dot_dimension_numbers<[1], [0], [0], [1], [0, 0, 1, 1], [], []>} : vector<128x8xbf16>, vector<8x128xbf16>, vector<128x128xf32> -> vector<128x128xf32>
      %c0_13 = arith.constant 0 : index
      %c0_14 = arith.constant 0 : index
      %19 = vector.load %arg5[%c0_13, %c0_14] : memref<1x128xf32, #tpu.memory_space<vmem>>, vector<1x128xf32>
      %20 = vector.broadcast %19 : vector<1x128xf32> to vector<128x128xf32>
      %21 = arith.addf %18, %20 : vector<128x128xf32>
      %cst_15 = arith.constant 0.000000e+00 : f32
      %22 = vector.broadcast %cst_15 : f32 to vector<128x128xf32>
      %23 = arith.maximumf %21, %22 : vector<128x128xf32>
      %24 = arith.truncf %23 : vector<128x128xf32> to vector<128x128xbf16>
      %c0_16 = arith.constant 0 : index
      %c0_17 = arith.constant 0 : index
      %25 = vector.load %arg6[%c0_16, %c0_17] : memref<128x128xbf16, #tpu.memory_space<vmem>>, vector<128x128xbf16>
      tpu.vector_store %arg6[%c0_16, %c0_17], %24 {strides = array<i32>} : memref<128x128xbf16, #tpu.memory_space<vmem>>, vector<128x128xbf16>,
    } else {
    }
    return
  }
  func.func @transform_0(%arg0: i32, %arg1: i32) -> (i32, i32) {
    %c0_i32 = arith.constant 0 : i32
    return %arg0, %arg1 : i32, i32
  }
  func.func @transform_1(%arg0: i32, %arg1: i32) -> (i32, i32) {
    %c0_i32 = arith.constant 0 : i32
    %c0_i32_0 = arith.constant 0 : i32
    %c0_i32_1 = arith.constant 0 : i32
    return %c0_i32, %c0_i32_0 : i32, i32
  }
  func.func @transform_2(%arg0: i32, %arg1: i32) -> (i32, i32) {
    %c0_i32 = arith.constant 0 : i32
    %c0_i32_0 = arith.constant 0 : i32
    %c0_i32_1 = arith.constant 0 : i32
    return %c0_i32, %c0_i32_0 : i32, i32
  }
  func.func @transform_3(%arg0: i32, %arg1: i32) -> (i32, i32) {
    %c0_i32 = arith.constant 0 : i32
    %c0_i32_0 = arith.constant 0 : i32
    %c0_i32_1 = arith.constant 0 : i32
    return %c0_i32, %c0_i32_0 : i32, i32
  }
  func.func @transform_4(%arg0: i32, %arg1: i32) -> (i32, i32) {
    %c0_i32 = arith.constant 0 : i32
    %c0_i32_0 = arith.constant 0 : i32
    return %arg0, %c0_i32 : i32, i32
  }
}

</mosaic_0001>

<llo_original>
// kernel: tpu_custom_call.1
$region0: #{tpu_custom_call.1}
  #allocation0 [shape = 'u32[]', space=smem, size = 0x4, offset = 0x4, fixed_abs, tag = 'smem constant byte address 0x4 - core index']
  #allocation1 [shape = 'u32[144,128]{1,0:T(1,128)}', space=vmem, size = 0x12000, scoped, tag = 'internal scratch']
  #allocation2 [shape = 'f32[128,8]{1,0:T(8,128)}', space=vmem, size = 0x10000, scoped, tag = 'scratch operand']
  %s0 = inlined_call_operand.hbm [shape: bf16[256,256], index: 0, kind: input, shape index: {}]
  %s1 = inlined_call_operand.vmem [shape: bf16[256,8], index: 1, kind: input, shape index: {}]
  %s2 = inlined_call_operand.vmem [shape: bf16[8,128], index: 2, kind: input, shape index: {}]
  %s3 = inlined_call_operand.vmem [shape: f32[1,128], index: 3, kind: input, shape index: {}]
  %s4 = inlined_call_operand.hbm [shape: bf16[256,128], index: 4, kind: output, shape index: {}]
  %s5 = sld [smem:[#allocation0]]
  $region61: #{tpu_custom_call.1} parent=0
    _
  %s7 = ssub.s32 1, %s5
  %s8 = scalar_select 0, %s7, %s5
  $region1: #{tpu_custom_call.1} parent=0
    #allocation3 [shape = 'u8[65536]{0}', space=vmem, size = 0x10000, scoped, tag = 'input window, operand 0']
    #allocation4 [shape = 's32[2]{0}', space=sflag, size = 0x8, scoped, tag = 'scoped memory for tpu_custom_call.1']
    #allocation5 [shape = 's32[2]{0}', space=sflag, size = 0x8, scoped, tag = 'scoped memory for tpu_custom_call.1']
    #allocation6 [shape = 'u8[65536]{0}', space=vmem, size = 0x10000, scoped, tag = 'output window, operand 0']
    %9 = vsyncpa [#allocation4], 0
    %s10 = scalar_lea.sflag [#allocation4], 1
    %11 = vsyncpa %s10, 0
    %12 = vsyncpa [#allocation5], 0
    %s13 = scalar_lea.sflag [#allocation5], 1
    %14 = vsyncpa %s13, 0
    loop: start=0, step=1, limit=6
    $region2: #{tpu_custom_call.1} parent=1 // loop_pre_header
      _
    $region3: #{tpu_custom_call.1} parent=1 // loop_header
      %s16 = sphi 0, %s20
      %p17 = scmp.ge.s32.totalorder %s16, 6
      %s23 = sphi 0, %s35
      %s24 = sphi 0, %s31
      %s25 = sphi 0, %s23
      %s26 = sphi 0, %s24
      %s27 = sphi 0, %s25
      %s28 = sphi 0, %s26
      %s40 = sphi 0, %s42
      %s43 = sphi 0, %s40
      %s44 = sphi 0, %s43
      %s60 = sphi 0, %s44
      %s64 = sphi 0, %s64
      %s66 = sphi 0, %s64
      %s67 = sphi 0, %s66
      %s81 = sphi 0, %s67
      %s85 = sphi 0, %s85
      %s87 = sphi 0, %s85
      %s88 = sphi 0, %s87
      %s102 = sphi 0, %s88
      %s106 = sphi 0, %s106
      %s108 = sphi 0, %s106
      %s109 = sphi 0, %s108
      %s123 = sphi 0, %s109
      %s129 = sphi 0, %s131
      %s132 = sphi 0, %s129
      %s133 = sphi 0, %s132
      %s149 = sphi 0, %s133
    $region4: #{tpu_custom_call.1} parent=1 // loop_header_branch
      %19 = sbr.rel (%p17) target = $region8
    $region5: #{tpu_custom_call.1} parent=1 // loop_body
      %s21 = ssub.s32 %s16, 1
      %s22 = ssub.s32 %s16, 2
      %s29 = sadd.s32 1, %s24
      %p30 = scmp.ge.s32.totalorder %s29, 2
      %s31 = scalar_select %p30, 0, %s29
      %s32 = sadd.s32 1, %s23
      %s33 = scalar_select %p30, %s32, %s23
      %p34 = scmp.ge.s32.totalorder %s33, 2
      %s35 = scalar_select %p34, 0, %s33
      %s36 = ssub.s32 %s23, %s35
      %s37 = ssub.s32 %s24, %s31
      %s38 = sor.u32 %s36, %s37
      %p39 = scmp.eq.s32.totalorder %s38, 0
      %s41 = sadd.s32 %s40, 1
      %s42 = scalar_select %p39, %s40, %s41
      %p45 = pneg %p39
      %p46 = scmp.eq.s32.totalorder %s16, 3
      %p47 = por %p45, %p46
      %p48 = scmp.ne.s32.totalorder %s40, %s43
      %p49 = scmp.eq.s32.totalorder %s16, 0
      %p50 = por %p48, %p49
      %p51 = scmp.ne.s32.totalorder %s40, %s43
      %p52 = scmp.eq.s32.totalorder %s21, 3
      %p53 = por %p51, %p52
      %p54 = scmp.ne.s32.totalorder %s43, %s44
      %p55 = scmp.eq.s32.totalorder %s21, 0
      %p56 = por %p54, %p55
      %p57 = scmp.ne.s32.totalorder %s43, %s44
      %p58 = scmp.eq.s32.totalorder %s22, 3
      %p59 = por %p57, %p58
      %p61 = scmp.ne.s32.totalorder %s44, %s60
      %p62 = scmp.eq.s32.totalorder %s22, 0
      %p63 = por %p61, %p62
      %s65 = sadd.s32 %s64, 1
      %p68 = scmp.eq.s32.totalorder %s16, 3
      %p69 = scmp.ne.s32.totalorder %s64, %s66
      %p70 = scmp.eq.s32.totalorder %s16, 0
      %p71 = por %p69, %p70
      %p72 = scmp.ne.s32.totalorder %s64, %s66
      %p73 = scmp.eq.s32.totalorder %s21, 3
      %p74 = por %p72, %p73
      %p75 = scmp.ne.s32.totalorder %s66, %s67
      %p76 = scmp.eq.s32.totalorder %s21, 0
      %p77 = por %p75, %p76
      %p78 = scmp.ne.s32.totalorder %s66, %s67
      %p79 = scmp.eq.s32.totalorder %s22, 3
      %p80 = por %p78, %p79
      %p82 = scmp.ne.s32.totalorder %s67, %s81
      %p83 = scmp.eq.s32.totalorder %s22, 0
      %p84 = por %p82, %p83
      %s86 = sadd.s32 %s85, 1
      %p89 = scmp.eq.s32.totalorder %s16, 3
      %p90 = scmp.ne.s32.totalorder %s85, %s87
      %p91 = scmp.eq.s32.totalorder %s16, 0
      %p92 = por %p90, %p91
      %p93 = scmp.ne.s32.totalorder %s85, %s87
      %p94 = scmp.eq.s32.totalorder %s21, 3
      %p95 = por %p93, %p94
      %p96 = scmp.ne.s32.totalorder %s87, %s88
      %p97 = scmp.eq.s32.totalorder %s21, 0
      %p98 = por %p96, %p97
      %p99 = scmp.ne.s32.totalorder %s87, %s88
      %p100 = scmp.eq.s32.totalorder %s22, 3
      %p101 = por %p99, %p100
      %p103 = scmp.ne.s32.totalorder %s88, %s102
      %p104 = scmp.eq.s32.totalorder %s22, 0
      %p105 = por %p103, %p104
      %s107 = sadd.s32 %s106, 1
      %p110 = scmp.eq.s32.totalorder %s16, 3
      %p111 = scmp.ne.s32.totalorder %s106, %s108
      %p112 = scmp.eq.s32.totalorder %s16, 0
      %p113 = por %p111, %p112
      %p114 = scmp.ne.s32.totalorder %s106, %s108
      %p115 = scmp.eq.s32.totalorder %s21, 3
      %p116 = por %p114, %p115
      %p117 = scmp.ne.s32.totalorder %s108, %s109
      %p118 = scmp.eq.s32.totalorder %s21, 0
      %p119 = por %p117, %p118
      %p120 = scmp.ne.s32.totalorder %s108, %s109
      %p121 = scmp.eq.s32.totalorder %s22, 3
      %p122 = por %p120, %p121
      %p124 = scmp.ne.s32.totalorder %s109, %s123
      %p125 = scmp.eq.s32.totalorder %s22, 0
      %p126 = por %p124, %p125
      %s127 = ssub.s32 %s23, %s35
      %p128 = scmp.eq.s32.totalorder %s127, 0
      %s130 = sadd.s32 %s129, 1
      %s131 = scalar_select %p128, %s129, %s130
      %p134 = pneg %p128
      %p135 = scmp.eq.s32.totalorder %s16, 3
      %p136 = por %p134, %p135
      %p137 = scmp.ne.s32.totalorder %s129, %s132
      %p138 = scmp.eq.s32.totalorder %s16, 0
      %p139 = por %p137, %p138
      %p140 = scmp.ne.s32.totalorder %s129, %s132
      %p141 = scmp.eq.s32.totalorder %s21, 3
      %p142 = por %p140, %p141
      %p143 = scmp.ne.s32.totalorder %s132, %s133
      %p144 = scmp.eq.s32.totalorder %s21, 0
      %p145 = por %p143, %p144
      %p146 = scmp.ne.s32.totalorder %s132, %s133
      %p147 = scmp.eq.s32.totalorder %s22, 3
      %p148 = por %p146, %p147
      %p150 = scmp.ne.s32.totalorder %s133, %s149
      %p151 = scmp.eq.s32.totalorder %s22, 0
      %p152 = por %p150, %p151
      %p153 = scmp.le.s32.totalorder 1, %s16
      %p154 = scmp.lt.s32.totalorder %s16, 5
      %p155 = pnand %p153, %p154
      %p156 = pneg %p155
      // Predicated region
      $region9: #{tpu_custom_call.1} parent=5 // pred_check
        _
      $region10: #{tpu_custom_call.1} parent=5 // pred_check_branch
        %158 = sbr.rel (%p155) target = $region12
      $region11: #{tpu_custom_call.1} parent=5 // pred_region
        %s159 = ssub.s32 %s16, 1
        // Predicated region
        $region13: #{tpu_custom_call.1} parent=11 // pred_check
          %p160 = pneg %p77
        $region14: #{tpu_custom_call.1} parent=11 // pred_check_branch
          %162 = sbr.rel (%p160) target = $region16
        $region15: #{tpu_custom_call.1} parent=11 // pred_region
          _
        $region16: #{tpu_custom_call.1} parent=11 // pred_fallthru
          _
        // Predicated region
        $region17: #{tpu_custom_call.1} parent=11 // pred_check
          %p163 = pneg %p98
        $region18: #{tpu_custom_call.1} parent=11 // pred_check_branch
          %165 = sbr.rel (%p163) target = $region20
        $region19: #{tpu_custom_call.1} parent=11 // pred_region
          _
        $region20: #{tpu_custom_call.1} parent=11 // pred_fallthru
          _
        // Predicated region
        $region21: #{tpu_custom_call.1} parent=11 // pred_check
          %p166 = pneg %p119
        $region22: #{tpu_custom_call.1} parent=11 // pred_check_branch
          %168 = sbr.rel (%p166) target = $region24
        $region23: #{tpu_custom_call.1} parent=11 // pred_region
          _
        $region24: #{tpu_custom_call.1} parent=11 // pred_fallthru
          _
      $region12: #{tpu_custom_call.1} parent=5 // pred_fallthru
        _
      %p169 = scmp.lt.s32.totalorder %s16, 4
      // Predicated region
      $region25: #{tpu_custom_call.1} parent=5 // pred_check
        %p170 = pneg %p169
      $region26: #{tpu_custom_call.1} parent=5 // pred_check_branch
        %172 = sbr.rel (%p170) target = $region28
      $region27: #{tpu_custom_call.1} parent=5 // pred_region
        // Predicated region
        $region29: #{tpu_custom_call.1} parent=27 // pred_check
          %p173 = pneg %p50
        $region30: #{tpu_custom_call.1} parent=27 // pred_check_branch
          %175 = sbr.rel (%p173) target = $region32
        $region31: #{tpu_custom_call.1} parent=27 // pred_region
          %s176 = sand.u32 %s40, 1
          %s177 = scalar_lea.sflag [#allocation4], %s176
          %s178 = sand.u32 %s40, 1
          %s179 = smul.addr %s178, 64
          %s180 = scalar_lea.vmem [#allocation3], %s179
          %s181 = smul.u32 16, %s23
          %s183 = ssub.s32 1024, 1024
          %184 = vsyncadd %s177, %s183
          %s185 = smul.addr %s181, 2
          %s186 = sadd.s32 %s24, %s185
          %s187 = smul.addr %s186, 64
          %s188 = scalar_lea.hbm %s0, %s187
          %s189 = sshll.u32 %s180, 4
          %s190 = int_to_ptr.vmem [resolvable:$true] %s189
          %195 = dma.hbm_to_vmem [thread:$0]  %s188, 1024, %s190, %s177, 128, 64, 4
        $region32: #{tpu_custom_call.1} parent=27 // pred_fallthru
          _
      $region28: #{tpu_custom_call.1} parent=5 // pred_fallthru
        _
      %p196 = scmp.le.s32.totalorder 1, %s16
      %p197 = scmp.lt.s32.totalorder %s16, 5
      %p198 = pnand %p196, %p197
      %p199 = pneg %p198
      // Predicated region
      $region33: #{tpu_custom_call.1} parent=5 // pred_check
        _
      $region34: #{tpu_custom_call.1} parent=5 // pred_check_branch
        %201 = sbr.rel (%p198) target = $region36
      $region35: #{tpu_custom_call.1} parent=5 // pred_region
        %s202 = ssub.s32 %s16, 1
        %s203 = sand.u32 %s43, 1
        %s204 = scalar_lea.sflag [#allocation4], %s203
        %s205 = sand.u32 %s43, 1
        %s206 = smul.addr %s205, 64
        %s207 = scalar_lea.vmem [#allocation3], %s206
        // Predicated region
        $region37: #{tpu_custom_call.1} parent=35 // pred_check
          %p208 = pneg %p56
        $region38: #{tpu_custom_call.1} parent=35 // pred_check_branch
          %210 = sbr.rel (%p208) target = $region40
        $region39: #{tpu_custom_call.1} parent=35 // pred_region
          %211 = dma.done %s204, 1024
        $region40: #{tpu_custom_call.1} parent=35 // pred_fallthru
          _
        %s212 = sand.u32 %s43, 1
        %s213 = scalar_lea.sflag [#allocation4], %s212
        %s214 = sand.u32 %s43, 1
        %s215 = smul.addr %s214, 64
        %s216 = scalar_lea.vmem [#allocation3], %s215
        %p217 = pneg %p56
        %p218 = pneg %p53
        %p219 = pneg %p77
        %p220 = pneg %p74
        %p221 = pneg %p98
        %p222 = pneg %p95
        %p223 = pneg %p119
        %p224 = pneg %p116
        %p225 = pneg %p145
        %p226 = pneg %p142
        %s227 = sand.u32 %s132, 1
        %s228 = scalar_lea.sflag [#allocation5], %s227
        %s229 = sand.u32 %s132, 1
        %s230 = smul.addr %s229, 64
        %s231 = scalar_lea.vmem [#allocation6], %s230
        %s232 = smul.u32 16, %s25
        %s233 = smul.u32 16, %s25
        %p235 = scmp.eq.s32.totalorder %s26, 0
        // Predicated region
        $region41: #{tpu_custom_call.1} parent=35 // pred_check
          %p236 = pneg %p235
        $region42: #{tpu_custom_call.1} parent=35 // pred_check_branch
          %238 = sbr.rel (%p236) target = $region44
        $region43: #{tpu_custom_call.1} parent=35 // pred_region
          %vm239 = vcmask 64512
          %240 = vst.msk [vmem:[#allocation2] sm:$0xff] %vm239, 0.0
          %241 = vst.msk [vmem:[#allocation2 + $0x8] sm:$0xff] %vm239, 0.0
          %242 = vst.msk [vmem:[#allocation2 + $0x10] sm:$0xff] %vm239, 0.0
          %243 = vst.msk [vmem:[#allocation2 + $0x18] sm:$0xff] %vm239, 0.0
          %244 = vst.msk [vmem:[#allocation2 + $0x20] sm:$0xff] %vm239, 0.0
          %245 = vst.msk [vmem:[#allocation2 + $0x28] sm:$0xff] %vm239, 0.0
          %246 = vst.msk [vmem:[#allocation2 + $0x30] sm:$0xff] %vm239, 0.0
          %247 = vst.msk [vmem:[#allocation2 + $0x38] sm:$0xff] %vm239, 0.0
          %248 = vst.msk [vmem:[#allocation2 + $0x40] sm:$0xff] %vm239, 0.0
          %249 = vst.msk [vmem:[#allocation2 + $0x48] sm:$0xff] %vm239, 0.0
          %250 = vst.msk [vmem:[#allocation2 + $0x50] sm:$0xff] %vm239, 0.0
          %251 = vst.msk [vmem:[#allocation2 + $0x58] sm:$0xff] %vm239, 0.0
          %252 = vst.msk [vmem:[#allocation2 + $0x60] sm:$0xff] %vm239, 0.0
          %253 = vst.msk [vmem:[#allocation2 + $0x68] sm:$0xff] %vm239, 0.0
          %254 = vst.msk [vmem:[#allocation2 + $0x70] sm:$0xff] %vm239, 0.0
          %255 = vst.msk [vmem:[#allocation2 + $0x78] sm:$0xff] %vm239, 0.0
        $region44: #{tpu_custom_call.1} parent=35 // pred_fallthru
          _
        %s256 = smul.u32 %s26, 128
        %v257 = vld [vmem:[#allocation2] sm:$0xff]
        %v258 = vld [vmem:[#allocation2 + $0x8] sm:$0xff]
        %v259 = vld [vmem:[#allocation2 + $0x10] sm:$0xff]
        %v260 = vld [vmem:[#allocation2 + $0x18] sm:$0xff]
        %v261 = vld [vmem:[#allocation2 + $0x20] sm:$0xff]
        %v262 = vld [vmem:[#allocation2 + $0x28] sm:$0xff]
        %v263 = vld [vmem:[#allocation2 + $0x30] sm:$0xff]
        %v264 = vld [vmem:[#allocation2 + $0x38] sm:$0xff]
        %v265 = vld [vmem:[#allocation2 + $0x40] sm:$0xff]
        %v266 = vld [vmem:[#allocation2 + $0x48] sm:$0xff]
        %v267 = vld [vmem:[#allocation2 + $0x50] sm:$0xff]
        %v268 = vld [vmem:[#allocation2 + $0x58] sm:$0xff]
        %v269 = vld [vmem:[#allocation2 + $0x60] sm:$0xff]
        %v270 = vld [vmem:[#allocation2 + $0x68] sm:$0xff]
        %v271 = vld [vmem:[#allocation2 + $0x70] sm:$0xff]
        %v272 = vld [vmem:[#allocation2 + $0x78] sm:$0xff]
        %v273 = vld [vmem:[%s207] sm:$0xf]
        %v274 = vld [vmem:[%s207 + $0x4] sm:$0xf]
        %v275 = vld [vmem:[%s207 + $0x8] sm:$0xf]
        %v276 = vld [vmem:[%s207 + $0xc] sm:$0xf]
        %v277 = vld [vmem:[%s207 + $0x10] sm:$0xf]
        %v278 = vld [vmem:[%s207 + $0x14] sm:$0xf]
        %v279 = vld [vmem:[%s207 + $0x18] sm:$0xf]
        %v280 = vld [vmem:[%s207 + $0x1c] sm:$0xf]
        %v281 = vld [vmem:[%s207 + $0x20] sm:$0xf]
        %v282 = vld [vmem:[%s207 + $0x24] sm:$0xf]
        %v283 = vld [vmem:[%s207 + $0x28] sm:$0xf]
        %v284 = vld [vmem:[%s207 + $0x2c] sm:$0xf]
        %v285 = vld [vmem:[%s207 + $0x30] sm:$0xf]
        %v286 = vld [vmem:[%s207 + $0x34] sm:$0xf]
        %v287 = vld [vmem:[%s207 + $0x38] sm:$0xf]
        %v288 = vld [vmem:[%s207 + $0x3c] sm:$0xf]
        %s289 = sshra.s32 %s256, 3
        %s290 = sand.u32 %s256, 7
        %s291 = smul.addr %s289, 4
        %s292 = scalar_lea.vmem %s1, %s291
        %v293 = vld [vmem:[%s292] sm:$0xf]
        %v294 = vld [vmem:[%s292 + $0x4] sm:$0xf]
        %v295 = vld [vmem:[%s292 + $0x8] sm:$0xf]
        %v296 = vld [vmem:[%s292 + $0xc] sm:$0xf]
        %v297 = vld [vmem:[%s292 + $0x10] sm:$0xf]
        %v298 = vld [vmem:[%s292 + $0x14] sm:$0xf]
        %v299 = vld [vmem:[%s292 + $0x18] sm:$0xf]
        %v300 = vld [vmem:[%s292 + $0x1c] sm:$0xf]
        %v301 = vld [vmem:[%s292 + $0x20] sm:$0xf]
        %v302 = vld [vmem:[%s292 + $0x24] sm:$0xf]
        %v303 = vld [vmem:[%s292 + $0x28] sm:$0xf]
        %v304 = vld [vmem:[%s292 + $0x2c] sm:$0xf]
        %v305 = vld [vmem:[%s292 + $0x30] sm:$0xf]
        %v306 = vld [vmem:[%s292 + $0x34] sm:$0xf]
        %v307 = vld [vmem:[%s292 + $0x38] sm:$0xf]
        %v308 = vld [vmem:[%s292 + $0x3c] sm:$0xf]
        %v325 = vunpack.c.l.b16 %v273
        %v326 = vunpack.c.l.b16 %v274
        %v327 = vunpack.c.l.b16 %v275
        %v328 = vunpack.c.l.b16 %v276
        %v329 = vunpack.c.l.b16 %v277
        %v330 = vunpack.c.l.b16 %v278
        %v331 = vunpack.c.l.b16 %v279
        %v332 = vunpack.c.l.b16 %v280
        %v333 = vunpack.c.l.b16 %v281
        %v334 = vunpack.c.l.b16 %v282
        %v335 = vunpack.c.l.b16 %v283
        %v336 = vunpack.c.l.b16 %v284
        %v337 = vunpack.c.l.b16 %v285
        %v338 = vunpack.c.l.b16 %v286
        %v339 = vunpack.c.l.b16 %v287
        %v340 = vunpack.c.l.b16 %v288
        %v341 = vpack.c.b16 %v326, %v325
        %v342 = vpack.c.b16 %v328, %v327
        %v343 = vpack.c.b16 %v330, %v329
        %v344 = vpack.c.b16 %v332, %v331
        %v345 = vpack.c.b16 %v334, %v333
        %v346 = vpack.c.b16 %v336, %v335
        %v347 = vpack.c.b16 %v338, %v337
        %v348 = vpack.c.b16 %v340, %v339
        %v373 = vunpack.c.l.b16 %v293
        %v374 = vunpack.c.l.b16 %v294
        %v375 = vunpack.c.l.b16 %v295
        %v376 = vunpack.c.l.b16 %v296
        %v377 = vunpack.c.l.b16 %v297
        %v378 = vunpack.c.l.b16 %v298
        %v379 = vunpack.c.l.b16 %v299
        %v380 = vunpack.c.l.b16 %v300
        %v381 = vunpack.c.l.b16 %v301
        %v382 = vunpack.c.l.b16 %v302
        %v383 = vunpack.c.l.b16 %v303
        %v384 = vunpack.c.l.b16 %v304
        %v385 = vunpack.c.l.b16 %v305
        %v386 = vunpack.c.l.b16 %v306
        %v387 = vunpack.c.l.b16 %v307
        %v388 = vunpack.c.l.b16 %v308
        %v389 = vpack.c.b16 %v374, %v373
        %v390 = vpack.c.b16 %v376, %v375
        %v391 = vpack.c.b16 %v378, %v377
        %v392 = vpack.c.b16 %v380, %v379
        %v393 = vpack.c.b16 %v382, %v381
        %v394 = vpack.c.b16 %v384, %v383
        %v395 = vpack.c.b16 %v386, %v385
        %v396 = vpack.c.b16 %v388, %v387
        %405 = vmatprep.subr.bf16.mxu0 0
        %406 = vmatpush1.bf16.msra.mxu0 %v389
        %407 = vmatprep.subr.bf16.mxu0 0
        %408 = vmatpush1.bf16.msra.mxu0 %v390
        %409 = vmatprep.subr.bf16.mxu0 0
        %410 = vmatpush1.bf16.msra.mxu0 %v391
        %411 = vmatprep.subr.bf16.mxu0 0
        %412 = vmatpush1.bf16.msra.mxu0 %v392
        %413 = vmatprep.subr.bf16.mxu0 0
        %414 = vmatpush1.bf16.msra.mxu0 %v393
        %415 = vmatprep.subr.bf16.mxu0 0
        %416 = vmatpush1.bf16.msra.mxu0 %v394
        %417 = vmatprep.subr.bf16.mxu0 0
        %418 = vmatpush1.bf16.msra.mxu0 %v395
        %419 = vmatprep.subr.bf16.mxu0 0
        %420 = vmatpush1.bf16.msra.mxu0 %v396
        %421 = vmatprep.subr.bf16.mxu0 0
        %422 = vmatpush1.bf16.msra.mxu0 0
        %423 = vmatprep.subr.bf16.mxu0 0
        %424 = vmatpush1.bf16.msra.mxu0 0
        %425 = vmatprep.subr.bf16.mxu0 0
        %426 = vmatpush1.bf16.msra.mxu0 0
        %427 = vmatprep.subr.bf16.mxu0 0
        %428 = vmatpush1.bf16.msra.mxu0 0
        %429 = vmatprep.subr.bf16.mxu0 0
        %430 = vmatpush1.bf16.msra.mxu0 0
        %431 = vmatprep.subr.bf16.mxu0 0
        %432 = vmatpush1.bf16.msra.mxu0 0
        %433 = vmatprep.subr.bf16.mxu0 0
        %434 = vmatpush1.bf16.msra.mxu0 0
        %435 = vmatprep.subr.bf16.mxu0 0
        %436 = vmatpush1.bf16.msra.mxu0 0
        %437 = vmatprep.mubr.bf16.mxu0 0
        %438 = vmatmul.mubr.bf16.gmra.mrb[0].mxu0 %v341
        %v439 = vpop.f32.mrb[0].mxu0
        %v440 = vadd.f32 0.0, %v439
        %v441 = vpop.f32.mrb[0].mxu0
        %v442 = vpop.f32.mrb[0].mxu0
        %v443 = vadd.f32 0.0, %v442
        %v444 = vpop.f32.mrb[0].mxu0
        %445 = vmatprep.mubr.bf16.mxu0 0
        %446 = vmatmul.mubr.bf16.gmra.mrb[0].mxu0 %v342
        %v447 = vpop.f32.mrb[0].mxu0
        %v448 = vadd.f32 0.0, %v447
        %v449 = vpop.f32.mrb[0].mxu0
        %v450 = vpop.f32.mrb[0].mxu0
        %v451 = vadd.f32 0.0, %v450
        %v452 = vpop.f32.mrb[0].mxu0
        %453 = vmatprep.mubr.bf16.mxu0 0
        %454 = vmatmul.mubr.bf16.gmra.mrb[0].mxu0 %v343
        %v455 = vpop.f32.mrb[0].mxu0
        %v456 = vadd.f32 0.0, %v455
        %v457 = vpop.f32.mrb[0].mxu0
        %v458 = vpop.f32.mrb[0].mxu0
        %v459 = vadd.f32 0.0, %v458
        %v460 = vpop.f32.mrb[0].mxu0
        %461 = vmatprep.mubr.bf16.mxu0 0
        %462 = vmatmul.mubr.bf16.gmra.mrb[0].mxu0 %v344
        %v463 = vpop.f32.mrb[0].mxu0
        %v464 = vadd.f32 0.0, %v463
        %v465 = vpop.f32.mrb[0].mxu0
        %v466 = vpop.f32.mrb[0].mxu0
        %v467 = vadd.f32 0.0, %v466
        %v468 = vpop.f32.mrb[0].mxu0
        %469 = vmatprep.mubr.bf16.mxu0 0
        %470 = vmatmul.mubr.bf16.gmra.mrb[0].mxu0 %v345
        %v471 = vpop.f32.mrb[0].mxu0
        %v472 = vadd.f32 0.0, %v471
        %v473 = vpop.f32.mrb[0].mxu0
        %v474 = vpop.f32.mrb[0].mxu0
        %v475 = vadd.f32 0.0, %v474
        %v476 = vpop.f32.mrb[0].mxu0
        %477 = vmatprep.mubr.bf16.mxu0 0
        %478 = vmatmul.mubr.bf16.gmra.mrb[0].mxu0 %v346
        %v479 = vpop.f32.mrb[0].mxu0
        %v480 = vadd.f32 0.0, %v479
        %v481 = vpop.f32.mrb[0].mxu0
        %v482 = vpop.f32.mrb[0].mxu0
        %v483 = vadd.f32 0.0, %v482
        %v484 = vpop.f32.mrb[0].mxu0
        %485 = vmatprep.mubr.bf16.mxu0 0
        %486 = vmatmul.mubr.bf16.gmra.mrb[0].mxu0 %v347
        %v487 = vpop.f32.mrb[0].mxu0
        %v488 = vadd.f32 0.0, %v487
        %v489 = vpop.f32.mrb[0].mxu0
        %v490 = vpop.f32.mrb[0].mxu0
        %v491 = vadd.f32 0.0, %v490
        %v492 = vpop.f32.mrb[0].mxu0
        %493 = vmatprep.mubr.bf16.mxu0 0
        %494 = vmatmul.mubr.bf16.gmra.mrb[0].mxu0 %v348
        %v495 = vpop.f32.mrb[0].mxu0
        %v496 = vadd.f32 0.0, %v495
        %v497 = vpop.f32.mrb[0].mxu0
        %v498 = vpop.f32.mrb[0].mxu0
        %v499 = vadd.f32 0.0, %v498
        %v500 = vpop.f32.mrb[0].mxu0
        %501 = vdwg.mxu0
        %v502 = vadd.f32 %v257, %v440
        %v503 = vadd.f32 %v258, %v443
        %v504 = vadd.f32 %v259, %v448
        %v505 = vadd.f32 %v260, %v451
        %v506 = vadd.f32 %v261, %v456
        %v507 = vadd.f32 %v262, %v459
        %v508 = vadd.f32 %v263, %v464
        %v509 = vadd.f32 %v264, %v467
        %v510 = vadd.f32 %v265, %v472
        %v511 = vadd.f32 %v266, %v475
        %v512 = vadd.f32 %v267, %v480
        %v513 = vadd.f32 %v268, %v483
        %v514 = vadd.f32 %v269, %v488
        %v515 = vadd.f32 %v270, %v491
        %v516 = vadd.f32 %v271, %v496
        %v517 = vadd.f32 %v272, %v499
        %vm518 = vcmask 64512
        %519 = vst.msk [vmem:[#allocation2] sm:$0xff] %vm518, %v502
        %520 = vst.msk [vmem:[#allocation2 + $0x8] sm:$0xff] %vm518, %v503
        %521 = vst.msk [vmem:[#allocation2 + $0x10] sm:$0xff] %vm518, %v504
        %522 = vst.msk [vmem:[#allocation2 + $0x18] sm:$0xff] %vm518, %v505
        %523 = vst.msk [vmem:[#allocation2 + $0x20] sm:$0xff] %vm518, %v506
        %524 = vst.msk [vmem:[#allocation2 + $0x28] sm:$0xff] %vm518, %v507
        %525 = vst.msk [vmem:[#allocation2 + $0x30] sm:$0xff] %vm518, %v508
        %526 = vst.msk [vmem:[#allocation2 + $0x38] sm:$0xff] %vm518, %v509
        %527 = vst.msk [vmem:[#allocation2 + $0x40] sm:$0xff] %vm518, %v510
        %528 = vst.msk [vmem:[#allocation2 + $0x48] sm:$0xff] %vm518, %v511
        %529 = vst.msk [vmem:[#allocation2 + $0x50] sm:$0xff] %vm518, %v512
        %530 = vst.msk [vmem:[#allocation2 + $0x58] sm:$0xff] %vm518, %v513
        %531 = vst.msk [vmem:[#allocation2 + $0x60] sm:$0xff] %vm518, %v514
        %532 = vst.msk [vmem:[#allocation2 + $0x68] sm:$0xff] %vm518, %v515
        %533 = vst.msk [vmem:[#allocation2 + $0x70] sm:$0xff] %vm518, %v516
        %534 = vst.msk [vmem:[#allocation2 + $0x78] sm:$0xff] %vm518, %v517
        %p535 = scmp.eq.s32.totalorder %s26, 1
        // Predicated region
        $region45: #{tpu_custom_call.1} parent=35 // pred_check
          %p536 = pneg %p535
        $region46: #{tpu_custom_call.1} parent=35 // pred_check_branch
          %538 = sbr.rel (%p536) target = $region48
        $region47: #{tpu_custom_call.1} parent=35 // pred_region
          %v539 = vld [vmem:[#allocation2] sm:$0xff]
          %v540 = vld [vmem:[#allocation2 + $0x8] sm:$0xff]
          %v541 = vld [vmem:[#allocation2 + $0x10] sm:$0xff]
          %v542 = vld [vmem:[#allocation2 + $0x18] sm:$0xff]
          %v543 = vld [vmem:[#allocation2 + $0x20] sm:$0xff]
          %v544 = vld [vmem:[#allocation2 + $0x28] sm:$0xff]
          %v545 = vld [vmem:[#allocation2 + $0x30] sm:$0xff]
          %v546 = vld [vmem:[#allocation2 + $0x38] sm:$0xff]
          %v547 = vld [vmem:[#allocation2 + $0x40] sm:$0xff]
          %v548 = vld [vmem:[#allocation2 + $0x48] sm:$0xff]
          %v549 = vld [vmem:[#allocation2 + $0x50] sm:$0xff]
          %v550 = vld [vmem:[#allocation2 + $0x58] sm:$0xff]
          %v551 = vld [vmem:[#allocation2 + $0x60] sm:$0xff]
          %v552 = vld [vmem:[#allocation2 + $0x68] sm:$0xff]
          %v553 = vld [vmem:[#allocation2 + $0x70] sm:$0xff]
          %v554 = vld [vmem:[#allocation2 + $0x78] sm:$0xff]
          %v555 = vpack.c.bf16 %v540, %v539
          %v556 = vpack.c.bf16 %v542, %v541
          %v557 = vpack.c.bf16 %v544, %v543
          %v558 = vpack.c.bf16 %v546, %v545
          %v559 = vpack.c.bf16 %v548, %v547
          %v560 = vpack.c.bf16 %v550, %v549
          %v561 = vpack.c.bf16 %v552, %v551
          %v562 = vpack.c.bf16 %v554, %v553
          %v563 = vld [vmem:[%s2] sm:$0xf]
          %v564 = vld [vmem:[%s3] sm:$0x1]
          %v566 = vlaneseq
          %v567 = vshrl.u32 %v566, 7
          %v568 = vsub.s32 0, %v567
          %v569 = vrot.slane %v564, %v568
          %v572 = vsel %vm518, %v555, 0
          %v575 = vsel %vm518, %v556, 0
          %v578 = vsel %vm518, %v557, 0
          %v581 = vsel %vm518, %v558, 0
          %v584 = vsel %vm518, %v559, 0
          %v587 = vsel %vm518, %v560, 0
          %v590 = vsel %vm518, %v561, 0
          %v593 = vsel %vm518, %v562, 0
          %vm595 = vcmask 1043456
          %v597 = vsel %vm595, %v563, 0
          %599 = vmatprep.subr.bf16.mxu0 0
          %600 = vmatpush1.bf16.msra.mxu0 %v597
          %601 = vmatprep.subr.bf16.mxu0 0
          %602 = vmatpush1.bf16.msra.mxu0 0
          %603 = vmatprep.subr.bf16.mxu0 0
          %604 = vmatpush1.bf16.msra.mxu0 0
          %605 = vmatprep.subr.bf16.mxu0 0
          %606 = vmatpush1.bf16.msra.mxu0 0
          %607 = vmatprep.subr.bf16.mxu0 0
          %608 = vmatpush1.bf16.msra.mxu0 0
          %609 = vmatprep.subr.bf16.mxu0 0
          %610 = vmatpush1.bf16.msra.mxu0 0
          %611 = vmatprep.subr.bf16.mxu0 0
          %612 = vmatpush1.bf16.msra.mxu0 0
          %613 = vmatprep.subr.bf16.mxu0 0
          %614 = vmatpush1.bf16.msra.mxu0 0
          %615 = vmatprep.subr.bf16.mxu0 0
          %616 = vmatpush1.bf16.msra.mxu0 0
          %617 = vmatprep.subr.bf16.mxu0 0
          %618 = vmatpush1.bf16.msra.mxu0 0
          %619 = vmatprep.subr.bf16.mxu0 0
          %620 = vmatpush1.bf16.msra.mxu0 0
          %621 = vmatprep.subr.bf16.mxu0 0
          %622 = vmatpush1.bf16.msra.mxu0 0
          %623 = vmatprep.subr.bf16.mxu0 0
          %624 = vmatpush1.bf16.msra.mxu0 0
          %625 = vmatprep.subr.bf16.mxu0 0
          %626 = vmatpush1.bf16.msra.mxu0 0
          %627 = vmatprep.subr.bf16.mxu0 0
          %628 = vmatpush1.bf16.msra.mxu0 0
          %629 = vmatprep.subr.bf16.mxu0 0
          %630 = vmatpush1.bf16.msra.mxu0 0
          %631 = vmatprep.mubr.bf16.mxu0 0
          %632 = vmatmul.mubr.bf16.gmra.mrb[0].mxu0 %v572
          %v633 = vpop.f32.mrb[0].mxu0
          %v634 = vadd.f32 %v569, %v633
          %v635 = vpop.f32.mrb[0].mxu0
          %v636 = vpop.f32.mrb[0].mxu0
          %v637 = vadd.f32 %v569, %v636
          %v638 = vpop.f32.mrb[0].mxu0
          %639 = vmatprep.mubr.bf16.mxu0 0
          %640 = vmatmul.mubr.bf16.gmra.mrb[0].mxu0 %v575
          %v641 = vpop.f32.mrb[0].mxu0
          %v642 = vadd.f32 %v569, %v641
          %v643 = vpop.f32.mrb[0].mxu0
          %v644 = vpop.f32.mrb[0].mxu0
          %v645 = vadd.f32 %v569, %v644
          %v646 = vpop.f32.mrb[0].mxu0
          %647 = vmatprep.mubr.bf16.mxu0 0
          %648 = vmatmul.mubr.bf16.gmra.mrb[0].mxu0 %v578
          %v649 = vpop.f32.mrb[0].mxu0
          %v650 = vadd.f32 %v569, %v649
          %v651 = vpop.f32.mrb[0].mxu0
          %v652 = vpop.f32.mrb[0].mxu0
          %v653 = vadd.f32 %v569, %v652
          %v654 = vpop.f32.mrb[0].mxu0
          %655 = vmatprep.mubr.bf16.mxu0 0
          %656 = vmatmul.mubr.bf16.gmra.mrb[0].mxu0 %v581
          %v657 = vpop.f32.mrb[0].mxu0
          %v658 = vadd.f32 %v569, %v657
          %v659 = vpop.f32.mrb[0].mxu0
          %v660 = vpop.f32.mrb[0].mxu0
          %v661 = vadd.f32 %v569, %v660
          %v662 = vpop.f32.mrb[0].mxu0
          %663 = vmatprep.mubr.bf16.mxu0 0
          %664 = vmatmul.mubr.bf16.gmra.mrb[0].mxu0 %v584
          %v665 = vpop.f32.mrb[0].mxu0
          %v666 = vadd.f32 %v569, %v665
          %v667 = vpop.f32.mrb[0].mxu0
          %v668 = vpop.f32.mrb[0].mxu0
          %v669 = vadd.f32 %v569, %v668
          %v670 = vpop.f32.mrb[0].mxu0
          %671 = vmatprep.mubr.bf16.mxu0 0
          %672 = vmatmul.mubr.bf16.gmra.mrb[0].mxu0 %v587
          %v673 = vpop.f32.mrb[0].mxu0
          %v674 = vadd.f32 %v569, %v673
          %v675 = vpop.f32.mrb[0].mxu0
          %v676 = vpop.f32.mrb[0].mxu0
          %v677 = vadd.f32 %v569, %v676
          %v678 = vpop.f32.mrb[0].mxu0
          %679 = vmatprep.mubr.bf16.mxu0 0
          %680 = vmatmul.mubr.bf16.gmra.mrb[0].mxu0 %v590
          %v681 = vpop.f32.mrb[0].mxu0
          %v682 = vadd.f32 %v569, %v681
          %v683 = vpop.f32.mrb[0].mxu0
          %v684 = vpop.f32.mrb[0].mxu0
          %v685 = vadd.f32 %v569, %v684
          %v686 = vpop.f32.mrb[0].mxu0
          %687 = vmatprep.mubr.bf16.mxu0 0
          %688 = vmatmul.mubr.bf16.gmra.mrb[0].mxu0 %v593
          %v689 = vpop.f32.mrb[0].mxu0
          %v690 = vadd.f32 %v569, %v689
          %v691 = vpop.f32.mrb[0].mxu0
          %v692 = vpop.f32.mrb[0].mxu0
          %v693 = vadd.f32 %v569, %v692
          %v694 = vpop.f32.mrb[0].mxu0
          %695 = vdwg.mxu0
          %v696 = vmax.f32 %v634, 0.0
          %v697 = vmax.f32 %v637, 0.0
          %v698 = vmax.f32 %v642, 0.0
          %v699 = vmax.f32 %v645, 0.0
          %v700 = vmax.f32 %v650, 0.0
          %v701 = vmax.f32 %v653, 0.0
          %v702 = vmax.f32 %v658, 0.0
          %v703 = vmax.f32 %v661, 0.0
          %v704 = vmax.f32 %v666, 0.0
          %v705 = vmax.f32 %v669, 0.0
          %v706 = vmax.f32 %v674, 0.0
          %v707 = vmax.f32 %v677, 0.0
          %v708 = vmax.f32 %v682, 0.0
          %v709 = vmax.f32 %v685, 0.0
          %v710 = vmax.f32 %v690, 0.0
          %v711 = vmax.f32 %v693, 0.0
          %v712 = vpack.c.bf16 %v697, %v696
          %v713 = vpack.c.bf16 %v699, %v698
          %v714 = vpack.c.bf16 %v701, %v700
          %v715 = vpack.c.bf16 %v703, %v702
          %v716 = vpack.c.bf16 %v705, %v704
          %v717 = vpack.c.bf16 %v707, %v706
          %v718 = vpack.c.bf16 %v709, %v708
          %v719 = vpack.c.bf16 %v711, %v710
          %v728 = vunpack.c.l.b16 %v712
          %v729 = vunpack.c.h.b16 %v712
          %v730 = vunpack.c.l.b16 %v713
          %v731 = vunpack.c.h.b16 %v713
          %v732 = vunpack.c.l.b16 %v714
          %v733 = vunpack.c.h.b16 %v714
          %v734 = vunpack.c.l.b16 %v715
          %v735 = vunpack.c.h.b16 %v715
          %v736 = vunpack.c.l.b16 %v716
          %v737 = vunpack.c.h.b16 %v716
          %v738 = vunpack.c.l.b16 %v717
          %v739 = vunpack.c.h.b16 %v717
          %v740 = vunpack.c.l.b16 %v718
          %v741 = vunpack.c.h.b16 %v718
          %v742 = vunpack.c.l.b16 %v719
          %v743 = vunpack.c.h.b16 %v719
          %v744 = vpack.c.b16 %v728, %v728
          %v745 = vpack.c.b16 %v729, %v729
          %v746 = vpack.c.b16 %v730, %v730
          %v747 = vpack.c.b16 %v731, %v731
          %v748 = vpack.c.b16 %v732, %v732
          %v749 = vpack.c.b16 %v733, %v733
          %v750 = vpack.c.b16 %v734, %v734
          %v751 = vpack.c.b16 %v735, %v735
          %v752 = vpack.c.b16 %v736, %v736
          %v753 = vpack.c.b16 %v737, %v737
          %v754 = vpack.c.b16 %v738, %v738
          %v755 = vpack.c.b16 %v739, %v739
          %v756 = vpack.c.b16 %v740, %v740
          %v757 = vpack.c.b16 %v741, %v741
          %v758 = vpack.c.b16 %v742, %v742
          %v759 = vpack.c.b16 %v743, %v743
          %776 = vst [vmem:[%s231] sm:$0xf] %v744
          %777 = vst [vmem:[%s231 + $0x4] sm:$0xf] %v745
          %778 = vst [vmem:[%s231 + $0x8] sm:$0xf] %v746
          %779 = vst [vmem:[%s231 + $0xc] sm:$0xf] %v747
          %780 = vst [vmem:[%s231 + $0x10] sm:$0xf] %v748
          %781 = vst [vmem:[%s231 + $0x14] sm:$0xf] %v749
          %782 = vst [vmem:[%s231 + $0x18] sm:$0xf] %v750
          %783 = vst [vmem:[%s231 + $0x1c] sm:$0xf] %v751
          %784 = vst [vmem:[%s231 + $0x20] sm:$0xf] %v752
          %785 = vst [vmem:[%s231 + $0x24] sm:$0xf] %v753
          %786 = vst [vmem:[%s231 + $0x28] sm:$0xf] %v754
          %787 = vst [vmem:[%s231 + $0x2c] sm:$0xf] %v755
          %788 = vst [vmem:[%s231 + $0x30] sm:$0xf] %v756
          %789 = vst [vmem:[%s231 + $0x34] sm:$0xf] %v757
          %790 = vst [vmem:[%s231 + $0x38] sm:$0xf] %v758
          %791 = vst [vmem:[%s231 + $0x3c] sm:$0xf] %v759
        $region48: #{tpu_custom_call.1} parent=35 // pred_fallthru
          _
        %s792 = sand.u32 %s132, 1
        %s793 = scalar_lea.sflag [#allocation5], %s792
        %s794 = sand.u32 %s132, 1
        %s795 = smul.addr %s794, 64
        %s796 = scalar_lea.vmem [#allocation6], %s795
        // Predicated region
        $region49: #{tpu_custom_call.1} parent=35 // pred_check
          %p797 = pneg %p142
        $region50: #{tpu_custom_call.1} parent=35 // pred_check_branch
          %799 = sbr.rel (%p797) target = $region52
        $region51: #{tpu_custom_call.1} parent=35 // pred_region
          %s800 = smul.u32 16, %s25
          %s802 = ssub.s32 1024, 1024
          %803 = vsyncadd %s793, %s802
          %s804 = smul.addr %s800, 64
          %s805 = scalar_lea.hbm %s4, %s804
          %s806 = sshll.u32 %s796, 4
          %s807 = int_to_ptr.vmem [resolvable:$true] %s806
          %812 = dma.vmem_to_hbm [thread:$0]  %s807, 1024, %s805, %s793, 64, 64, 4
        $region52: #{tpu_custom_call.1} parent=35 // pred_fallthru
          _
      $region36: #{tpu_custom_call.1} parent=5 // pred_fallthru
        _
      %p813 = scmp.le.s32.totalorder 2, %s16
      // Predicated region
      $region53: #{tpu_custom_call.1} parent=5 // pred_check
        %p814 = pneg %p813
      $region54: #{tpu_custom_call.1} parent=5 // pred_check_branch
        %816 = sbr.rel (%p814) target = $region56
      $region55: #{tpu_custom_call.1} parent=5 // pred_region
        %s817 = ssub.s32 %s16, 2
        // Predicated region
        $region57: #{tpu_custom_call.1} parent=55 // pred_check
          %p818 = pneg %p148
        $region58: #{tpu_custom_call.1} parent=55 // pred_check_branch
          %820 = sbr.rel (%p818) target = $region60
        $region59: #{tpu_custom_call.1} parent=55 // pred_region
          %s821 = sand.u32 %s133, 1
          %s822 = scalar_lea.sflag [#allocation5], %s821
          %s823 = sand.u32 %s133, 1
          %s824 = smul.addr %s823, 64
          %s825 = scalar_lea.vmem [#allocation6], %s824
          %826 = dma.done %s822, 1024
        $region60: #{tpu_custom_call.1} parent=55 // pred_fallthru
          _
      $region56: #{tpu_custom_call.1} parent=5 // pred_fallthru
        _
    $region6: #{tpu_custom_call.1} parent=1 // loop_footer
      %s20 = sadd.s32 1, %s16
    $region7: #{tpu_custom_call.1} parent=1 // loop_footer_branch
      %15 = sbr.rel target = $region3
    $region8: #{tpu_custom_call.1} parent=1 // loop_exit
      _
    %827 = vsyncpa [#allocation4], 1
    %s828 = scalar_lea.sflag [#allocation4], 1
    %829 = vsyncpa %s828, 1
    %830 = vsyncpa [#allocation5], 1
    %s831 = scalar_lea.sflag [#allocation5], 1
    %832 = vsyncpa %s831, 1

</llo_original>
